<compile_context>
chip_gen: v7x
topology: tpu7x:2x2x1
jax: 0.10.0
libtpu: 0.0.40
codegen_flags: <defaults>
</compile_context>

<pallas_src>
import functools

import jax
import jax.numpy as jnp
from jax import lax
from jax.experimental import pallas as pl
from jax.experimental.pallas import tpu as pltpu

_LANE = 128


def _dice_loss_kernel(pred_ref, tgt_ref, out_ref, num_acc, den_acc, *,
                      smooth, chunk, n_chunks, last_full_chunks,
                      last_tail_valid, n_hw):
    h = pl.program_id(1)

    @pl.when(h == 0)
    def _init():
        num_acc[...] = jnp.zeros_like(num_acc)
        den_acc[...] = jnp.zeros_like(den_acc)

    def process_chunk(start, tail_valid=None):
        p = pred_ref[:, :, pl.ds(start, chunk)].astype(jnp.float32)  # (1,C,chunk)
        t = tgt_ref[:, :, pl.ds(start, chunk)].astype(jnp.float32)   # (1,C,chunk)

        # Channel softmax (numerically stable). The reciprocal runs on the EUP
        # slot (approx=True); one Newton step on the VPU restores ~f32 accuracy.
        m = jnp.max(p, axis=1, keepdims=True)
        e = jnp.exp(p - m)
        denom = jnp.sum(e, axis=1, keepdims=True)            # (1,1,chunk), >= 1
        inv = pl.reciprocal(denom, approx=True)
        inv = inv * (2.0 - denom * inv)                       # Newton refinement
        s = e * inv

        pn = s * t                                            # (1,C,chunk)
        pd = s * s + t * t                                    # (1,C,chunk)

        if tail_valid is not None:
            # Static mask for the ragged tail of the LAST chunk of the LAST HW
            # tile: out-of-bounds lanes hold unspecified data, so both the
            # s*t and s^2+t^2 contributions must be zeroed (select, not mul,
            # so NaN/Inf garbage cannot leak through).
            lane = lax.broadcasted_iota(jnp.int32, (1, 1, chunk), 2)
            valid = lane < tail_valid
            pn = jnp.where(valid, pn, 0.0)
            pd = jnp.where(valid, pd, 0.0)

        # Fold the chunk down to 128 per-lane partials with lane-aligned VPU
        # adds; the cross-lane XLU collapse is deferred to finalize.
        fn = pn[:, :, 0:_LANE]
        fd = pd[:, :, 0:_LANE]
        for b in range(1, chunk // _LANE):
            sl = slice(b * _LANE, (b + 1) * _LANE)
            fn = fn + pn[:, :, sl]
            fd = fd + pd[:, :, sl]
        num_acc[...] += fn
        den_acc[...] += fd

    def chunk_loop(n_iter):
        if n_iter == 1:
            process_chunk(0)
        elif n_iter > 1:
            def body(j, carry):
                process_chunk(pl.multiple_of(j * chunk, chunk))
                return carry
            lax.fori_loop(0, n_iter, body, 0, unroll=(n_iter <= 8))

    def full_tile():
        chunk_loop(n_chunks)

    def last_tile():
        # Fully-valid chunks first, then one statically-masked tail chunk;
        # fully out-of-bounds chunks are skipped entirely (never loaded).
        chunk_loop(last_full_chunks)
        if last_tail_valid > 0:
            process_chunk(last_full_chunks * chunk, tail_valid=last_tail_valid)

    last_is_full = (last_full_chunks == n_chunks) and (last_tail_valid == 0)
    if last_is_full:
        full_tile()                       # no masking path at all
    elif n_hw == 1:
        last_tile()
    else:
        @pl.when(h < n_hw - 1)
        def _full():
            full_tile()

        @pl.when(h == n_hw - 1)
        def _last():
            last_tile()

    @pl.when(h == n_hw - 1)
    def _finalize():
        num = jnp.sum(num_acc[...], axis=-1, keepdims=True) + smooth  # (1,C,1)
        den = jnp.sum(den_acc[...], axis=-1, keepdims=True) + smooth  # (1,C,1)
        out_ref[...] = 1.0 - num / den


def dice_loss(predict, target, smooth=1.0, max_block_bytes=2 * 1024 * 1024):
    """predict, target: [N, C, *] arrays of the same shape. Scalar f32 loss."""
    assert predict.shape == target.shape, "predict & target shape do not match"
    N, C = predict.shape[0], predict.shape[1]
    HW = 1
    for d in predict.shape[2:]:
        HW *= d

    pred = predict.reshape(N, C, HW)
    tgt = target.reshape(N, C, HW)
    # One-hot targets (module contract) are exactly representable in bf16:
    # halves the target HBM traffic on a bandwidth-bound kernel.
    if tgt.dtype == jnp.float32:
        tgt = tgt.astype(jnp.bfloat16)

    # --- spatial tile selection (no wrapper-side padding) --------------------
    # Per-input block <= ~2 MiB so 2 inputs x 2 pipeline buffers stay well
    # inside every generation's default scoped-VMEM budget; the chunked body
    # keeps intermediates in vregs.
    lane_blocks = pl.cdiv(HW, _LANE)
    cap_k = max(1, max_block_bytes // (C * 4 * _LANE))
    cap_k = min(cap_k, lane_blocks)
    k = cap_k
    while lane_blocks % k:
        k -= 1
    if 2 * k < cap_k:
        # No decent divisor: take the full cap and let the kernel statically
        # skip / mask the ragged last tile instead of shrinking every tile.
        k = cap_k
    t_hw = k * _LANE
    n_hw = pl.cdiv(HW, t_hw)

    # Lane-chunk for the in-kernel loop: large enough to amortize, small
    # enough that the (1, C, chunk) f32 working set stays in vregs.
    chunk = _LANE
    for c_try in (1024, 512, 256):
        if t_hw % c_try == 0 and C * c_try <= 8192:
            chunk = c_try
            break
    n_chunks = t_hw // chunk

    valid_last = HW - (n_hw - 1) * t_hw        # valid lanes in the last HW tile
    last_full_chunks = valid_last // chunk
    last_tail_valid = valid_last % chunk

    kernel = functools.partial(
        _dice_loss_kernel, smooth=float(smooth), chunk=chunk,
        n_chunks=n_chunks, last_full_chunks=last_full_chunks,
        last_tail_valid=last_tail_valid, n_hw=n_hw)

    dice_nc = pl.pallas_call(
        kernel,
        out_shape=jax.ShapeDtypeStruct((N, C, 1), jnp.float32),
        grid_spec=pltpu.PrefetchScalarGridSpec(
            num_scalar_prefetch=0,
            grid=(N, n_hw),                             # HW reduction axis LAST
            in_specs=[
                pl.BlockSpec((1, C, t_hw), lambda n, h: (n, 0, h)),
                pl.BlockSpec((1, C, t_hw), lambda n, h: (n, 0, h)),
            ],
            out_specs=pl.BlockSpec((1, C, 1), lambda n, h: (n, 0, 0)),
            scratch_shapes=[
                pltpu.VMEM((1, C, _LANE), jnp.float32),   # per-lane num partials
                pltpu.VMEM((1, C, _LANE), jnp.float32),   # per-lane den partials
            ],
        ),
        compiler_params=pltpu.CompilerParams(
            dimension_semantics=("parallel", "arbitrary"),
        ),
    )(pred, tgt)

    # (1/C) * sum_c mean_n dice[n, c] == mean over (n, c). Tiny reduction in XLA.
    return jnp.mean(dice_nc[..., 0])


def _dice_loss_ref(predict, target, smooth=1.0):
    """Pure-JAX reference mirroring the PyTorch module."""
    N, C = predict.shape[0], predict.shape[1]
    s = jax.nn.softmax(predict, axis=1)
    p = s.reshape(N, C, -1)
    t = target.reshape(N, C, -1)
    num = jnp.sum(p * t, axis=2) + smooth
    den = jnp.sum(p ** 2 + t ** 2, axis=2) + smooth
    per_class = jnp.mean(1.0 - num / den, axis=0)   # mean over batch, per class
    return jnp.sum(per_class) / C


def _one_hot_nchw(labels, C):
    return jnp.transpose(jax.nn.one_hot(labels, C, dtype=jnp.float32),
                         (0, 3, 1, 2))


if __name__ == "__main__":
    key = jax.random.PRNGKey(0)
    k1, k2, k3, k4 = jax.random.split(key, 4)

    # Case 1: HW a multiple of 128 -> no masking path at all.
    N, C, H, W = 2, 4, 16, 16
    predict = jax.random.normal(k1, (N, C, H, W), dtype=jnp.float32)
    labels = jax.random.randint(k2, (N, H, W), 0, C)
    target = _one_hot_nchw(labels, C)
    loss = jax.block_until_ready(dice_loss(predict, target))
    ref = _dice_loss_ref(predict, target)
    assert jnp.allclose(loss, ref, atol=1e-4, rtol=1e-4), (loss, ref)

    # Case 2: HW NOT a multiple of 128 -> single ragged tile, masked tail chunk.
    N2, C2, H2, W2 = 2, 3, 10, 10
    predict2 = jax.random.normal(k3, (N2, C2, H2, W2), dtype=jnp.float32)
    labels2 = jax.random.randint(k4, (N2, H2, W2), 0, C2)
    target2 = _one_hot_nchw(labels2, C2)
    loss2 = jax.block_until_ready(dice_loss(predict2, target2))
    ref2 = _dice_loss_ref(predict2, target2)
    assert jnp.allclose(loss2, ref2, atol=1e-4, rtol=1e-4), (loss2, ref2)

    # Case 3: small block cap -> multiple HW tiles + ragged LAST tile
    # (exercises the pl.when full/last split and the static OOB-skip path).
    k5, k6 = jax.random.split(k3)
    N3, C3, H3, W3 = 1, 4, 20, 20
    predict3 = jax.random.normal(k5, (N3, C3, H3, W3), dtype=jnp.float32)
    labels3 = jax.random.randint(k6, (N3, H3, W3), 0, C3)
    target3 = _one_hot_nchw(labels3, C3)
    loss3 = jax.block_until_ready(
        dice_loss(predict3, target3, max_block_bytes=C3 * 4 * _LANE * 2))
    ref3 = _dice_loss_ref(predict3, target3)
    assert jnp.allclose(loss3, ref3, atol=1e-4, rtol=1e-4), (loss3, ref3)

    # Case 4: tile needing multiple lane-chunks -> exercises the fori_loop body.
    k7, k8 = jax.random.split(k4)
    N4, C4, H4, W4 = 2, 4, 24, 32
    predict4 = jax.random.normal(k7, (N4, C4, H4, W4), dtype=jnp.float32)
    labels4 = jax.random.randint(k8, (N4, H4, W4), 0, C4)
    target4 = _one_hot_nchw(labels4, C4)
    loss4 = jax.block_until_ready(
        dice_loss(predict4, target4, max_block_bytes=C4 * 4 * _LANE * 3))
    ref4 = _dice_loss_ref(predict4, target4)
    assert jnp.allclose(loss4, ref4, atol=1e-4, rtol=1e-4), (loss4, ref4)

    print("KERNEL_OK")
</pallas_src>

<mosaic_0001>
module attributes {stable_mosaic.version = 11 : i64} {
  func.func @_dice_loss_kernel(%arg0: i32, %arg1: i32, %arg2: memref<1x4x256xf32, #tpu.memory_space<vmem>>, %arg3: memref<1x4x256xbf16, #tpu.memory_space<vmem>>, %arg4: memref<1x4x1xf32, #tpu.memory_space<vmem>>, %arg5: memref<1x4x128xf32, #tpu.memory_space<vmem>>, %arg6: memref<1x4x128xf32, #tpu.memory_space<vmem>>) attributes {dimension_semantics = [#tpu.dimension_semantics<parallel>, #tpu.dimension_semantics<arbitrary>], iteration_bounds = array<i64: 2, 1>, scalar_prefetch = 0 : i64, scratch_operands = 2 : i64, tpu.core_type = #tpu.core_type<tc>, window_params = [{transform_indices = @transform_0, window_bounds = array<i64: 1, 4, 256>}, {transform_indices = @transform_1, window_bounds = array<i64: 1, 4, 256>}, {transform_indices = @transform_2, window_bounds = array<i64: 1, 4, 1>}]} {
    %c0_i32 = arith.constant 0 : i32
    %0 = arith.cmpi eq, %arg1, %c0_i32 : i32
    %1 = arith.extui %0 : i1 to i32
    %c0_i32_0 = arith.constant 0 : i32
    %2 = arith.cmpi ne, %1, %c0_i32_0 : i32
    scf.if %2 {
      %cst_22 = arith.constant 0.000000e+00 : f32
      %39 = vector.broadcast %cst_22 : f32 to vector<1x4x128xf32>
      %c0_23 = arith.constant 0 : index
      %c0_24 = arith.constant 0 : index
      %c0_25 = arith.constant 0 : index
      %40 = vector.load %arg5[%c0_23, %c0_24, %c0_25] : memref<1x4x128xf32, #tpu.memory_space<vmem>>, vector<1x4x128xf32>
      tpu.vector_store %arg5[%c0_23, %c0_24, %c0_25], %39 {strides = array<i32>} : memref<1x4x128xf32, #tpu.memory_space<vmem>>, vector<1x4x128xf32>,
      %cst_26 = arith.constant 0.000000e+00 : f32
      %41 = vector.broadcast %cst_26 : f32 to vector<1x4x128xf32>
      %c0_27 = arith.constant 0 : index
      %c0_28 = arith.constant 0 : index
      %c0_29 = arith.constant 0 : index
      %42 = vector.load %arg6[%c0_27, %c0_28, %c0_29] : memref<1x4x128xf32, #tpu.memory_space<vmem>>, vector<1x4x128xf32>
      tpu.vector_store %arg6[%c0_27, %c0_28, %c0_29], %41 {strides = array<i32>} : memref<1x4x128xf32, #tpu.memory_space<vmem>>, vector<1x4x128xf32>,
    } else {
    }
    %c0 = arith.constant 0 : index
    %c0_1 = arith.constant 0 : index
    %c0_2 = arith.constant 0 : index
    %3 = vector.load %arg2[%c0, %c0_1, %c0_2] : memref<1x4x256xf32, #tpu.memory_space<vmem>>, vector<1x4x256xf32>
    %c0_3 = arith.constant 0 : index
    %c0_4 = arith.constant 0 : index
    %c0_5 = arith.constant 0 : index
    %4 = vector.load %arg3[%c0_3, %c0_4, %c0_5] : memref<1x4x256xbf16, #tpu.memory_space<vmem>>, vector<1x4x256xbf16>
    %5 = arith.extf %4 : vector<1x4x256xbf16> to vector<1x4x256xf32>
    %cst = arith.constant dense<0xFF800000> : vector<1x256xf32>
    %6 = vector.multi_reduction <maximumf>, %3, %cst [1] : vector<1x4x256xf32> to vector<1x256xf32>
    %7 = vector.shape_cast %6 : vector<1x256xf32> to vector<1x1x256xf32>
    %8 = vector.broadcast %7 : vector<1x1x256xf32> to vector<1x4x256xf32>
    %9 = arith.subf %3, %8 : vector<1x4x256xf32>
    %10 = math.exp %9 : vector<1x4x256xf32>
    %cst_6 = arith.constant dense<0.000000e+00> : vector<1x256xf32>
    %11 = vector.multi_reduction <add>, %10, %cst_6 [1] : vector<1x4x256xf32> to vector<1x256xf32>
    %12 = vector.shape_cast %11 : vector<1x256xf32> to vector<1x1x256xf32>
    %13 = tpu.reciprocal %12 {approx = true} : vector<1x1x256xf32> -> vector<1x1x256xf32>
    %14 = arith.mulf %12, %13 : vector<1x1x256xf32>
    %cst_7 = arith.constant 2.000000e+00 : f32
    %15 = vector.broadcast %cst_7 : f32 to vector<1x1x256xf32>
    %16 = arith.subf %15, %14 : vector<1x1x256xf32>
    %17 = arith.mulf %13, %16 : vector<1x1x256xf32>
    %18 = vector.broadcast %17 : vector<1x1x256xf32> to vector<1x4x256xf32>
    %19 = arith.mulf %10, %18 : vector<1x4x256xf32>
    %20 = arith.mulf %19, %5 : vector<1x4x256xf32>
    %21 = arith.mulf %19, %19 : vector<1x4x256xf32>
    %22 = arith.mulf %5, %5 : vector<1x4x256xf32>
    %23 = arith.addf %21, %22 : vector<1x4x256xf32>
    %24 = vector.extract_strided_slice %20 {offsets = [0, 0, 0], sizes = [1, 4, 128], strides = [1, 1, 1]} : vector<1x4x256xf32> to vector<1x4x128xf32>
    %25 = vector.extract_strided_slice %23 {offsets = [0, 0, 0], sizes = [1, 4, 128], strides = [1, 1, 1]} : vector<1x4x256xf32> to vector<1x4x128xf32>
    %26 = vector.extract_strided_slice %20 {offsets = [0, 0, 128], sizes = [1, 4, 128], strides = [1, 1, 1]} : vector<1x4x256xf32> to vector<1x4x128xf32>
    %27 = arith.addf %24, %26 : vector<1x4x128xf32>
    %28 = vector.extract_strided_slice %23 {offsets = [0, 0, 128], sizes = [1, 4, 128], strides = [1, 1, 1]} : vector<1x4x256xf32> to vector<1x4x128xf32>
    %29 = arith.addf %25, %28 : vector<1x4x128xf32>
    %c0_8 = arith.constant 0 : index
    %c0_9 = arith.constant 0 : index
    %c0_10 = arith.constant 0 : index
    %30 = vector.load %arg5[%c0_8, %c0_9, %c0_10] : memref<1x4x128xf32, #tpu.memory_space<vmem>>, vector<1x4x128xf32>
    %31 = arith.addf %30, %27 : vector<1x4x128xf32>
    %c0_11 = arith.constant 0 : index
    %c0_12 = arith.constant 0 : index
    %c0_13 = arith.constant 0 : index
    %32 = vector.load %arg5[%c0_11, %c0_12, %c0_13] : memref<1x4x128xf32, #tpu.memory_space<vmem>>, vector<1x4x128xf32>
    tpu.vector_store %arg5[%c0_11, %c0_12, %c0_13], %31 {strides = array<i32>} : memref<1x4x128xf32, #tpu.memory_space<vmem>>, vector<1x4x128xf32>,
    %c0_14 = arith.constant 0 : index
    %c0_15 = arith.constant 0 : index
    %c0_16 = arith.constant 0 : index
    %33 = vector.load %arg6[%c0_14, %c0_15, %c0_16] : memref<1x4x128xf32, #tpu.memory_space<vmem>>, vector<1x4x128xf32>
    %34 = arith.addf %33, %29 : vector<1x4x128xf32>
    %c0_17 = arith.constant 0 : index
    %c0_18 = arith.constant 0 : index
    %c0_19 = arith.constant 0 : index
    %35 = vector.load %arg6[%c0_17, %c0_18, %c0_19] : memref<1x4x128xf32, #tpu.memory_space<vmem>>, vector<1x4x128xf32>
    tpu.vector_store %arg6[%c0_17, %c0_18, %c0_19], %34 {strides = array<i32>} : memref<1x4x128xf32, #tpu.memory_space<vmem>>, vector<1x4x128xf32>,
    %c0_i32_20 = arith.constant 0 : i32
    %36 = arith.cmpi eq, %arg1, %c0_i32_20 : i32
    %37 = arith.extui %36 : i1 to i32
    %c0_i32_21 = arith.constant 0 : i32
    %38 = arith.cmpi ne, %37, %c0_i32_21 : i32
    scf.if %38 {
      %c0_22 = arith.constant 0 : index
      %c0_23 = arith.constant 0 : index
      %c0_24 = arith.constant 0 : index
      %39 = vector.load %arg5[%c0_22, %c0_23, %c0_24] : memref<1x4x128xf32, #tpu.memory_space<vmem>>, vector<1x4x128xf32>
      %cst_25 = arith.constant dense<0.000000e+00> : vector<1x4xf32>
      %40 = vector.multi_reduction <add>, %39, %cst_25 [2] : vector<1x4x128xf32> to vector<1x4xf32>
      %41 = vector.shape_cast %40 : vector<1x4xf32> to vector<1x4x1xf32>
      %cst_26 = arith.constant 1.000000e+00 : f32
      %42 = vector.broadcast %cst_26 : f32 to vector<1x4x1xf32>
      %43 = arith.addf %41, %42 : vector<1x4x1xf32>
      %c0_27 = arith.constant 0 : index
      %c0_28 = arith.constant 0 : index
      %c0_29 = arith.constant 0 : index
      %44 = vector.load %arg6[%c0_27, %c0_28, %c0_29] : memref<1x4x128xf32, #tpu.memory_space<vmem>>, vector<1x4x128xf32>
      %cst_30 = arith.constant dense<0.000000e+00> : vector<1x4xf32>
      %45 = vector.multi_reduction <add>, %44, %cst_30 [2] : vector<1x4x128xf32> to vector<1x4xf32>
      %46 = vector.shape_cast %45 : vector<1x4xf32> to vector<1x4x1xf32>
      %cst_31 = arith.constant 1.000000e+00 : f32
      %47 = vector.broadcast %cst_31 : f32 to vector<1x4x1xf32>
      %48 = arith.addf %46, %47 : vector<1x4x1xf32>
      %49 = arith.divf %43, %48 : vector<1x4x1xf32>
      %cst_32 = arith.constant 1.000000e+00 : f32
      %50 = vector.broadcast %cst_32 : f32 to vector<1x4x1xf32>
      %51 = arith.subf %50, %49 : vector<1x4x1xf32>
      %c0_33 = arith.constant 0 : index
      %c0_34 = arith.constant 0 : index
      %c0_35 = arith.constant 0 : index
      %52 = vector.load %arg4[%c0_33, %c0_34, %c0_35] : memref<1x4x1xf32, #tpu.memory_space<vmem>>, vector<1x4x1xf32>
      tpu.vector_store %arg4[%c0_33, %c0_34, %c0_35], %51 {strides = array<i32>} : memref<1x4x1xf32, #tpu.memory_space<vmem>>, vector<1x4x1xf32>,
    } else {
    }
    return
  }
  func.func @transform_0(%arg0: i32, %arg1: i32) -> (i32, i32, i32) {
    %c0_i32 = arith.constant 0 : i32
    %c0_i32_0 = arith.constant 0 : i32
    return %arg0, %c0_i32, %arg1 : i32, i32, i32
  }
  func.func @transform_1(%arg0: i32, %arg1: i32) -> (i32, i32, i32) {
    %c0_i32 = arith.constant 0 : i32
    %c0_i32_0 = arith.constant 0 : i32
    return %arg0, %c0_i32, %arg1 : i32, i32, i32
  }
  func.func @transform_2(%arg0: i32, %arg1: i32) -> (i32, i32, i32) {
    %c0_i32 = arith.constant 0 : i32
    %c0_i32_0 = arith.constant 0 : i32
    %c0_i32_1 = arith.constant 0 : i32
    return %arg0, %c0_i32, %c0_i32_0 : i32, i32, i32
  }
}

</mosaic_0001>

<llo_original>
// kernel: tpu_custom_call.1
$region0: #{tpu_custom_call.1}
  #allocation0 [shape = 'u32[]', space=smem, size = 0x4, offset = 0x4, fixed_abs, tag = 'smem constant byte address 0x4 - core index']
  #allocation1 [shape = 'u32[144,128]{1,0:T(1,128)}', space=vmem, size = 0x12000, scoped, tag = 'internal scratch']
  #allocation2 [shape = 'f32[1,4,128]{2,1,0:T(4,128)}', space=vmem, size = 0x800, scoped, tag = 'scratch operand']
  #allocation3 [shape = 'f32[1,4,128]{2,1,0:T(4,128)}', space=vmem, size = 0x800, scoped, tag = 'scratch operand']
  %s0 = inlined_call_operand.hbm [shape: f32[2,4,256], index: 0, kind: input, shape index: {}]
  %s1 = inlined_call_operand.hbm [shape: bf16[2,4,256], index: 1, kind: input, shape index: {}]
  %s2 = inlined_call_operand.vmem [shape: f32[2,4,1], index: 2, kind: output, shape index: {}]
  %s3 = sld [smem:[#allocation0]]
  $region57: #{tpu_custom_call.1} parent=0
    _
  %s5 = ssub.s32 1, %s3
  %s6 = scalar_select 0, %s5, %s3
  $region1: #{tpu_custom_call.1} parent=0
    #allocation4 [shape = 'u8[8192]{0}', space=vmem, size = 0x2000, scoped, tag = 'input window, operand 0']
    #allocation5 [shape = 's32[2]{0}', space=sflag, size = 0x8, scoped, tag = 'scoped memory for tpu_custom_call.1']
    #allocation6 [shape = 'u8[4096]{0}', space=vmem, size = 0x1000, scoped, tag = 'input window, operand 1']
    #allocation7 [shape = 's32[2]{0}', space=sflag, size = 0x8, scoped, tag = 'scoped memory for tpu_custom_call.1']
    %7 = vsyncpa [#allocation5], 0
    %s8 = scalar_lea.sflag [#allocation5], 1
    %9 = vsyncpa %s8, 0
    %10 = vsyncpa [#allocation7], 0
    %s11 = scalar_lea.sflag [#allocation7], 1
    %12 = vsyncpa %s11, 0
    loop: start=0, step=1, limit=4
    $region2: #{tpu_custom_call.1} parent=1 // loop_pre_header
      _
    $region3: #{tpu_custom_call.1} parent=1 // loop_header
      %s14 = sphi 0, %s18
      %p15 = scmp.ge.s32.totalorder %s14, 4
      %s21 = sphi 0, %s33
      %s22 = sphi 0, %s29
      %s23 = sphi 0, %s21
      %s24 = sphi 0, %s22
      %s25 = sphi 0, %s23
      %s26 = sphi 0, %s24
      %s38 = sphi 0, %s40
      %s41 = sphi 0, %s38
      %s42 = sphi 0, %s41
      %s58 = sphi 0, %s42
      %s66 = sphi 0, %s68
      %s69 = sphi 0, %s66
      %s70 = sphi 0, %s69
      %s86 = sphi 0, %s70
      %s92 = sphi 0, %s94
      %s95 = sphi 0, %s92
      %s96 = sphi 0, %s95
      %s112 = sphi 0, %s96
    $region4: #{tpu_custom_call.1} parent=1 // loop_header_branch
      %17 = sbr.rel (%p15) target = $region8
    $region5: #{tpu_custom_call.1} parent=1 // loop_body
      %s19 = ssub.s32 %s14, 1
      %s20 = ssub.s32 %s14, 2
      %s27 = sadd.s32 1, %s22
      %p28 = scmp.ge.s32.totalorder %s27, 1
      %s29 = scalar_select %p28, 0, %s27
      %s30 = sadd.s32 1, %s21
      %s31 = scalar_select %p28, %s30, %s21
      %p32 = scmp.ge.s32.totalorder %s31, 2
      %s33 = scalar_select %p32, 0, %s31
      %s34 = ssub.s32 %s21, %s33
      %s35 = ssub.s32 %s22, %s29
      %s36 = sor.u32 %s34, %s35
      %p37 = scmp.eq.s32.totalorder %s36, 0
      %s39 = sadd.s32 %s38, 1
      %s40 = scalar_select %p37, %s38, %s39
      %p43 = pneg %p37
      %p44 = scmp.eq.s32.totalorder %s14, 1
      %p45 = por %p43, %p44
      %p46 = scmp.ne.s32.totalorder %s38, %s41
      %p47 = scmp.eq.s32.totalorder %s14, 0
      %p48 = por %p46, %p47
      %p49 = scmp.ne.s32.totalorder %s38, %s41
      %p50 = scmp.eq.s32.totalorder %s19, 1
      %p51 = por %p49, %p50
      %p52 = scmp.ne.s32.totalorder %s41, %s42
      %p53 = scmp.eq.s32.totalorder %s19, 0
      %p54 = por %p52, %p53
      %p55 = scmp.ne.s32.totalorder %s41, %s42
      %p56 = scmp.eq.s32.totalorder %s20, 1
      %p57 = por %p55, %p56
      %p59 = scmp.ne.s32.totalorder %s42, %s58
      %p60 = scmp.eq.s32.totalorder %s20, 0
      %p61 = por %p59, %p60
      %s62 = ssub.s32 %s21, %s33
      %s63 = ssub.s32 %s22, %s29
      %s64 = sor.u32 %s62, %s63
      %p65 = scmp.eq.s32.totalorder %s64, 0
      %s67 = sadd.s32 %s66, 1
      %s68 = scalar_select %p65, %s66, %s67
      %p71 = pneg %p65
      %p72 = scmp.eq.s32.totalorder %s14, 1
      %p73 = por %p71, %p72
      %p74 = scmp.ne.s32.totalorder %s66, %s69
      %p75 = scmp.eq.s32.totalorder %s14, 0
      %p76 = por %p74, %p75
      %p77 = scmp.ne.s32.totalorder %s66, %s69
      %p78 = scmp.eq.s32.totalorder %s19, 1
      %p79 = por %p77, %p78
      %p80 = scmp.ne.s32.totalorder %s69, %s70
      %p81 = scmp.eq.s32.totalorder %s19, 0
      %p82 = por %p80, %p81
      %p83 = scmp.ne.s32.totalorder %s69, %s70
      %p84 = scmp.eq.s32.totalorder %s20, 1
      %p85 = por %p83, %p84
      %p87 = scmp.ne.s32.totalorder %s70, %s86
      %p88 = scmp.eq.s32.totalorder %s20, 0
      %p89 = por %p87, %p88
      %s90 = ssub.s32 %s21, %s33
      %p91 = scmp.eq.s32.totalorder %s90, 0
      %s93 = sadd.s32 %s92, 1
      %s94 = scalar_select %p91, %s92, %s93
      %p97 = pneg %p91
      %p98 = scmp.eq.s32.totalorder %s14, 1
      %p99 = por %p97, %p98
      %p100 = scmp.ne.s32.totalorder %s92, %s95
      %p101 = scmp.eq.s32.totalorder %s14, 0
      %p102 = por %p100, %p101
      %p103 = scmp.ne.s32.totalorder %s92, %s95
      %p104 = scmp.eq.s32.totalorder %s19, 1
      %p105 = por %p103, %p104
      %p106 = scmp.ne.s32.totalorder %s95, %s96
      %p107 = scmp.eq.s32.totalorder %s19, 0
      %p108 = por %p106, %p107
      %p109 = scmp.ne.s32.totalorder %s95, %s96
      %p110 = scmp.eq.s32.totalorder %s20, 1
      %p111 = por %p109, %p110
      %p113 = scmp.ne.s32.totalorder %s96, %s112
      %p114 = scmp.eq.s32.totalorder %s20, 0
      %p115 = por %p113, %p114
      %p116 = scmp.le.s32.totalorder 1, %s14
      %p117 = scmp.lt.s32.totalorder %s14, 3
      %p118 = pnand %p116, %p117
      %p119 = pneg %p118
      // Predicated region
      $region9: #{tpu_custom_call.1} parent=5 // pred_check
        _
      $region10: #{tpu_custom_call.1} parent=5 // pred_check_branch
        %121 = sbr.rel (%p118) target = $region12
      $region11: #{tpu_custom_call.1} parent=5 // pred_region
        %s122 = ssub.s32 %s14, 1
      $region12: #{tpu_custom_call.1} parent=5 // pred_fallthru
        _
      %p123 = scmp.lt.s32.totalorder %s14, 2
      // Predicated region
      $region13: #{tpu_custom_call.1} parent=5 // pred_check
        %p124 = pneg %p123
      $region14: #{tpu_custom_call.1} parent=5 // pred_check_branch
        %126 = sbr.rel (%p124) target = $region16
      $region15: #{tpu_custom_call.1} parent=5 // pred_region
        // Predicated region
        $region17: #{tpu_custom_call.1} parent=15 // pred_check
          %p127 = pneg %p48
        $region18: #{tpu_custom_call.1} parent=15 // pred_check_branch
          %129 = sbr.rel (%p127) target = $region20
        $region19: #{tpu_custom_call.1} parent=15 // pred_region
          %s130 = sand.u32 %s38, 1
          %s131 = scalar_lea.sflag [#allocation5], %s130
          %s132 = sand.u32 %s38, 1
          %s133 = smul.addr %s132, 8
          %s134 = scalar_lea.vmem [#allocation4], %s133
          %s135 = smul.u32 2, %s22
          %s137 = ssub.s32 128, 128
          %138 = vsyncadd %s131, %s137
          %s139 = smul.addr %s21, 2
          %s140 = sadd.s32 %s135, %s139
          %s141 = smul.addr %s140, 64
          %s142 = scalar_lea.hbm %s0, %s141
          %s144 = sshll.u32 %s134, 4
          %s145 = int_to_ptr.vmem [resolvable:$true] %s144
          %147 = dma.hbm_to_vmem [thread:$0]  %s142, 128, %s145, %s131
        $region20: #{tpu_custom_call.1} parent=15 // pred_fallthru
          _
        // Predicated region
        $region21: #{tpu_custom_call.1} parent=15 // pred_check
          %p148 = pneg %p76
        $region22: #{tpu_custom_call.1} parent=15 // pred_check_branch
          %150 = sbr.rel (%p148) target = $region24
        $region23: #{tpu_custom_call.1} parent=15 // pred_region
          %s151 = sand.u32 %s66, 1
          %s152 = scalar_lea.sflag [#allocation7], %s151
          %s153 = sand.u32 %s66, 1
          %s154 = smul.addr %s153, 4
          %s155 = scalar_lea.vmem [#allocation6], %s154
          %s156 = smul.u32 2, %s22
          %s158 = ssub.s32 64, 64
          %159 = vsyncadd %s152, %s158
          %s160 = smul.addr %s21, 2
          %s161 = sadd.s32 %s156, %s160
          %s162 = smul.addr %s161, 32
          %s163 = scalar_lea.hbm %s1, %s162
          %s165 = sshll.u32 %s155, 4
          %s166 = int_to_ptr.vmem [resolvable:$true] %s165
          %168 = dma.hbm_to_vmem [thread:$0]  %s163, 64, %s166, %s152
        $region24: #{tpu_custom_call.1} parent=15 // pred_fallthru
          _
      $region16: #{tpu_custom_call.1} parent=5 // pred_fallthru
        _
      %p169 = scmp.le.s32.totalorder 1, %s14
      %p170 = scmp.lt.s32.totalorder %s14, 3
      %p171 = pnand %p169, %p170
      %p172 = pneg %p171
      // Predicated region
      $region25: #{tpu_custom_call.1} parent=5 // pred_check
        _
      $region26: #{tpu_custom_call.1} parent=5 // pred_check_branch
        %174 = sbr.rel (%p171) target = $region28
      $region27: #{tpu_custom_call.1} parent=5 // pred_region
        %s175 = ssub.s32 %s14, 1
        %s176 = sand.u32 %s41, 1
        %s177 = scalar_lea.sflag [#allocation5], %s176
        %s178 = sand.u32 %s41, 1
        %s179 = smul.addr %s178, 8
        %s180 = scalar_lea.vmem [#allocation4], %s179
        // Predicated region
        $region29: #{tpu_custom_call.1} parent=27 // pred_check
          %p181 = pneg %p54
        $region30: #{tpu_custom_call.1} parent=27 // pred_check_branch
          %183 = sbr.rel (%p181) target = $region32
        $region31: #{tpu_custom_call.1} parent=27 // pred_region
          %184 = dma.done %s177, 128
        $region32: #{tpu_custom_call.1} parent=27 // pred_fallthru
          _
        %s185 = sand.u32 %s69, 1
        %s186 = scalar_lea.sflag [#allocation7], %s185
        %s187 = sand.u32 %s69, 1
        %s188 = smul.addr %s187, 4
        %s189 = scalar_lea.vmem [#allocation6], %s188
        // Predicated region
        $region33: #{tpu_custom_call.1} parent=27 // pred_check
          %p190 = pneg %p82
        $region34: #{tpu_custom_call.1} parent=27 // pred_check_branch
          %192 = sbr.rel (%p190) target = $region36
        $region35: #{tpu_custom_call.1} parent=27 // pred_region
          %193 = dma.done %s186, 64
        $region36: #{tpu_custom_call.1} parent=27 // pred_fallthru
          _
        %s194 = sand.u32 %s41, 1
        %s195 = scalar_lea.sflag [#allocation5], %s194
        %s196 = sand.u32 %s41, 1
        %s197 = smul.addr %s196, 8
        %s198 = scalar_lea.vmem [#allocation4], %s197
        %p199 = pneg %p54
        %p200 = pneg %p51
        %s201 = sand.u32 %s69, 1
        %s202 = scalar_lea.sflag [#allocation7], %s201
        %s203 = sand.u32 %s69, 1
        %s204 = smul.addr %s203, 4
        %s205 = scalar_lea.vmem [#allocation6], %s204
        %p206 = pneg %p82
        %p207 = pneg %p79
        %p208 = pneg %p108
        %p209 = pneg %p105
        %p210 = scmp.lt.s32.totalorder %s23, 1
        %s211 = scalar_select %p210, %s23, 1
        %s212 = smul.addr %s211, 4
        %s213 = scalar_lea.vmem %s2, %s212
        %s214 = smul.u32 2, %s24
        %s215 = smul.u32 2, %s24
        %p216 = scmp.lt.s32.totalorder %s23, 1
        %s217 = scalar_select %p216, %s23, 1
        %s218 = smul.addr %s217, 4
        %s219 = scalar_lea.vmem %s2, %s218
        %p220 = scmp.eq.s32.totalorder %s24, 0
        // Predicated region
        $region37: #{tpu_custom_call.1} parent=27 // pred_check
          %p221 = pneg %p220
        $region38: #{tpu_custom_call.1} parent=27 // pred_check_branch
          %223 = sbr.rel (%p221) target = $region40
        $region39: #{tpu_custom_call.1} parent=27 // pred_region
          %224 = vst [vmem:[#allocation2] sm:$0xf] 0.0
          %225 = vst [vmem:[#allocation3] sm:$0xf] 0.0
        $region40: #{tpu_custom_call.1} parent=27 // pred_fallthru
          _
        %v226 = vld [vmem:[%s180] sm:$0xff]
        %v227 = vld [vmem:[%s189] sm:$0xf]
        %v228 = vunpack.c.l.bf16 %v227
        %v230 = vcombine.high %v226, %v226
        %vm232 = vcmask 1043456
        %v233 = vsel %vm232, %v226, -inf
        %v234 = vrot.slane %v233, 4
        %v235 = vmax.f32 %v233, %v234
        %v236 = vrot.slane %v235, 2
        %v237 = vmax.f32 %v235, %v236
        %v238 = vrot.slane %v237, 1
        %v239 = vmax.f32 %v237, %v238
        %v240 = vsel %vm232, %v230, -inf
        %v241 = vrot.slane %v240, 4
        %v242 = vmax.f32 %v240, %v241
        %v243 = vrot.slane %v242, 2
        %v244 = vmax.f32 %v242, %v243
        %v245 = vrot.slane %v244, 1
        %v246 = vmax.f32 %v244, %v245
        %v249 = vcombine.low %v239, %v246
        %v251 = vsub.f32 %v226, %v249
        %v252 = vmul.f32 %v251, 1.442695
        %v253 = vpow.pop %v252
        %v255 = vcombine.high %v253, %v253
        %v257 = vsel %vm232, %v253, 0.0
        %v258 = vrot.slane %v257, 4
        %v259 = vadd.f32 %v257, %v258
        %v260 = vrot.slane %v259, 2
        %v261 = vadd.f32 %v259, %v260
        %v262 = vrot.slane %v261, 1
        %v263 = vadd.f32 %v261, %v262
        %v264 = vsel %vm232, %v255, 0.0
        %v265 = vrot.slane %v264, 4
        %v266 = vadd.f32 %v264, %v265
        %v267 = vrot.slane %v266, 2
        %v268 = vadd.f32 %v266, %v267
        %v269 = vrot.slane %v268, 1
        %v270 = vadd.f32 %v268, %v269
        %v271 = vrcp.pop %v263
        %v272 = vrcp.pop %v270
        %v273 = vmul.f32 %v263, %v271
        %v274 = vmul.f32 %v270, %v272
        %v275 = vsub.f32 2.0, %v273
        %v276 = vsub.f32 2.0, %v274
        %v277 = vmul.f32 %v271, %v275
        %v278 = vmul.f32 %v272, %v276
        %v281 = vcombine.low %v277, %v278
        %v283 = vmul.f32 %v253, %v281
        %v284 = vmul.f32 %v283, %v228
        %v285 = vmul.f32 %v283, %v283
        %v286 = vmul.f32 %v228, %v228
        %v287 = vadd.f32 %v285, %v286
        %v289 = vrot.slane %v284, 4
        %v291 = vadd.f32 %v284, %v289
        %v293 = vrot.slane %v287, 4
        %v295 = vadd.f32 %v287, %v293
        %v296 = vld [vmem:[#allocation2] sm:$0xf]
        %v297 = vadd.f32 %v296, %v291
        %298 = vst [vmem:[#allocation2] sm:$0xf] %v297
        %v299 = vld [vmem:[#allocation3] sm:$0xf]
        %v300 = vadd.f32 %v299, %v295
        %301 = vst [vmem:[#allocation3] sm:$0xf] %v300
        // Predicated region
        $region41: #{tpu_custom_call.1} parent=27 // pred_check
          %p302 = pneg %p220
        $region42: #{tpu_custom_call.1} parent=27 // pred_check_branch
          %304 = sbr.rel (%p302) target = $region44
        $region43: #{tpu_custom_call.1} parent=27 // pred_region
          %v305 = vld [vmem:[#allocation2] sm:$0xf]
          %v306 = vsel %vm232, %v305, 0.0
          %307 = vadd.xlane.f32.xlu0 %v306
          %v308 = vpop.xlane.xlu0 %307
          %v309 = vadd.f32 %v308, 1.0
          %v310 = vld [vmem:[#allocation3] sm:$0xf]
          %v311 = vsel %vm232, %v310, 0.0
          %312 = vadd.xlane.f32.xlu0 %v311
          %v313 = vpop.xlane.xlu0 %312
          %v314 = vadd.f32 %v313, 1.0
          %v315 = vrcp.pop %v314
          %v316 = vmul.f32 %v309, %v315
          %v317 = vsub.f32 1.0, %v316
          %vm318 = vcmask 3072
          %319 = vst.msk [vmem:[%s219] sm:$0xf] %vm318, %v317
        $region44: #{tpu_custom_call.1} parent=27 // pred_fallthru
          _
        %p320 = scmp.lt.s32.totalorder %s23, 1
        %s321 = scalar_select %p320, %s23, 1
        %s322 = smul.addr %s321, 4
        %s323 = scalar_lea.vmem %s2, %s322
        // Predicated region
        $region45: #{tpu_custom_call.1} parent=27 // pred_check
          %p324 = pneg %p105
        $region46: #{tpu_custom_call.1} parent=27 // pred_check_branch
          %326 = sbr.rel (%p324) target = $region48
        $region47: #{tpu_custom_call.1} parent=27 // pred_region
          _
        $region48: #{tpu_custom_call.1} parent=27 // pred_fallthru
          _
      $region28: #{tpu_custom_call.1} parent=5 // pred_fallthru
        _
      %p327 = scmp.le.s32.totalorder 2, %s14
      // Predicated region
      $region49: #{tpu_custom_call.1} parent=5 // pred_check
        %p328 = pneg %p327
      $region50: #{tpu_custom_call.1} parent=5 // pred_check_branch
        %330 = sbr.rel (%p328) target = $region52
      $region51: #{tpu_custom_call.1} parent=5 // pred_region
        %s331 = ssub.s32 %s14, 2
        // Predicated region
        $region53: #{tpu_custom_call.1} parent=51 // pred_check
          %p332 = pneg %p111
        $region54: #{tpu_custom_call.1} parent=51 // pred_check_branch
          %334 = sbr.rel (%p332) target = $region56
        $region55: #{tpu_custom_call.1} parent=51 // pred_region
          %p335 = scmp.lt.s32.totalorder %s25, 1
          %s336 = scalar_select %p335, %s25, 1
          %s337 = smul.addr %s336, 4
          %s338 = scalar_lea.vmem %s2, %s337
        $region56: #{tpu_custom_call.1} parent=51 // pred_fallthru
          _
      $region52: #{tpu_custom_call.1} parent=5 // pred_fallthru
        _
    $region6: #{tpu_custom_call.1} parent=1 // loop_footer
      %s18 = sadd.s32 1, %s14
    $region7: #{tpu_custom_call.1} parent=1 // loop_footer_branch
      %13 = sbr.rel target = $region3
    $region8: #{tpu_custom_call.1} parent=1 // loop_exit
      _
    %339 = vsyncpa [#allocation5], 1
    %s340 = scalar_lea.sflag [#allocation5], 1
    %341 = vsyncpa %s340, 1
    %342 = vsyncpa [#allocation7], 1
    %s343 = scalar_lea.sflag [#allocation7], 1
    %344 = vsyncpa %s343, 1

</llo_original>
